<compile_context>
chip_gen: v7x
topology: tpu7x:2x2x1
jax: 0.10.0
libtpu: 0.0.40
codegen_flags: <defaults>
</compile_context>

<pallas_src>
import jax
import jax.numpy as jnp
from jax.experimental import pallas as pl
from jax.experimental.pallas import tpu as pltpu


def _round_up(n, m):
    return ((n + m - 1) // m) * m


def _vmem_capacity_bytes():
    # Generation-aware budget; conservative (v7x = 64 MiB) fallback if query fails.
    try:
        return int(pltpu.get_tpu_info().vmem_capacity_bytes)
    except Exception:
        return 64 * 1024 * 1024


def vector_field_kernel(x_ref, w1_ref, b1_ref, w2_ref, b2_ref, w3_ref, b3_ref, o_ref):
    x = x_ref[...]                                                     # (TB, 4)

    # fc1 on the MXU: (TB,4)@(4,64). K=4 underutilizes the MXU but the MXU has
    # slack here; this removes the rank-1 broadcast filler from the VALU.
    h = jnp.dot(x, w1_ref[...], preferred_element_type=jnp.float32) + b1_ref[...]
    h = jnp.maximum(h, 0.0)                                            # (TB, 64)

    # fc2 on the MXU: (TB,64)@(64,64), f32 accumulation.
    h = jnp.dot(h, w2_ref[...], preferred_element_type=jnp.float32) + b2_ref[...]
    h = jnp.maximum(h, 0.0)                                            # (TB, 64)

    # fc3: (TB,64)@(64,2) -> written straight to the (B,2) output window.
    out = jnp.dot(h, w3_ref[...], preferred_element_type=jnp.float32) + b3_ref[...]
    o_ref[...] = out.astype(o_ref.dtype)


def vector_field_net(x, params, tb=None):
    """x: (B, 4) float32 -> (B, 2) float32. No wrapper-side transposes/pads/slices."""
    w1, b1, w2, b2, w3, b3 = params            # (4,64),(1,64),(64,64),(1,64),(64,2),(1,2)
    B = x.shape[0]

    vmem_cap = _vmem_capacity_bytes()
    big_vmem = vmem_cap >= 100 * 1024 * 1024           # v5e/v6e: 128 MiB; v7x: 64 MiB
    tb_cap = tb if tb is not None else (8192 if big_vmem else 4096)
    tb_cap = _round_up(max(8, int(tb_cap)), 8)
    vmem_limit = (64 if big_vmem else 40) * 1024 * 1024

    # Batch tile: multiple of 8 sublanes, as large as the VMEM budget allows.
    TB = min(tb_cap, _round_up(B, 8))
    # Keep >= 2 grid steps when there's real work so the "parallel" batch axis can
    # be split across v7x's two TensorCores.
    if B > 2048 and -(-B // TB) < 2:
        TB = _round_up(-(-B // 2), 8)
    grid = (-(-B // TB),)                      # partial last block handled by Pallas

    return pl.pallas_call(
        vector_field_kernel,
        out_shape=jax.ShapeDtypeStruct((B, 2), jnp.float32),
        grid=grid,
        in_specs=[
            pl.BlockSpec((TB, 4), lambda i: (i, 0)),     # x tile, pipelined per step
            pl.BlockSpec((4, 64), lambda i: (0, 0)),     # weights/biases: VMEM-resident
            pl.BlockSpec((1, 64), lambda i: (0, 0)),
            pl.BlockSpec((64, 64), lambda i: (0, 0)),
            pl.BlockSpec((1, 64), lambda i: (0, 0)),
            pl.BlockSpec((64, 2), lambda i: (0, 0)),
            pl.BlockSpec((1, 2), lambda i: (0, 0)),
        ],
        out_specs=pl.BlockSpec((TB, 2), lambda i: (i, 0)),
        compiler_params=pltpu.CompilerParams(
            dimension_semantics=("parallel",),           # megacore sharding on v7x
            vmem_limit_bytes=vmem_limit,
        ),
    )(x, w1, b1, w2, b2, w3, b3)


def init_params(key):
    # Deterministic init mimicking nn.Linear's uniform(-1/sqrt(fan_in), 1/sqrt(fan_in)).
    k1, k2, k3, k4, k5, k6 = jax.random.split(key, 6)

    def lin(kw, kb, fan_in, fan_out):
        bound = 1.0 / jnp.sqrt(fan_in)
        # Stored as (in, out) so both kernel and reference compute x @ W + b
        # (== PyTorch x @ W.T + b with W stored (out, in)).
        w = jax.random.uniform(kw, (fan_in, fan_out), jnp.float32, -bound, bound)
        b = jax.random.uniform(kb, (1, fan_out), jnp.float32, -bound, bound)
        return w, b

    w1, b1 = lin(k1, k2, 4, 64)
    w2, b2 = lin(k3, k4, 64, 64)
    w3, b3 = lin(k5, k6, 64, 2)
    return (w1, b1, w2, b2, w3, b3)


def reference(x, params):
    w1, b1, w2, b2, w3, b3 = params
    h = jnp.maximum(x @ w1 + b1, 0.0)
    h = jnp.maximum(h @ w2 + b2, 0.0)
    return h @ w3 + b3


if __name__ == "__main__":
    key = jax.random.PRNGKey(0)
    kx, kp, kx2, kx3 = jax.random.split(key, 4)
    params = init_params(kp)

    # Small primary example, consistent with the module (batch=8, features=4).
    B = 8
    x = jax.random.normal(kx, (B, 4), jnp.float32)
    out = jax.block_until_ready(vector_field_net(x, params))
    assert out.shape == (B, 2)
    assert jnp.allclose(out, reference(x, params), atol=1e-5, rtol=1e-5)

    # Ragged batch: exercises the partial-last-block path (no explicit padding).
    B2 = 777
    x2 = jax.random.normal(kx2, (B2, 4), jnp.float32)
    out2 = jax.block_until_ready(vector_field_net(x2, params))
    assert out2.shape == (B2, 2)
    assert jnp.allclose(out2, reference(x2, params), atol=1e-5, rtol=1e-5)

    # Multi-step grid + resident weights across steps (explicit small tile).
    B3 = 4100
    x3 = jax.random.normal(kx3, (B3, 4), jnp.float32)
    out3 = jax.block_until_ready(vector_field_net(x3, params, tb=2048))
    assert out3.shape == (B3, 2)
    assert jnp.allclose(out3, reference(x3, params), atol=1e-5, rtol=1e-5)

    print("KERNEL_OK")
</pallas_src>

<mosaic_0001>
module attributes {stable_mosaic.version = 11 : i64} {
  func.func @vector_field_kernel(%arg0: i32, %arg1: memref<8x4xf32, #tpu.memory_space<vmem>>, %arg2: memref<4x64xf32, #tpu.memory_space<vmem>>, %arg3: memref<1x64xf32, #tpu.memory_space<vmem>>, %arg4: memref<64x64xf32, #tpu.memory_space<vmem>>, %arg5: memref<1x64xf32, #tpu.memory_space<vmem>>, %arg6: memref<64x2xf32, #tpu.memory_space<vmem>>, %arg7: memref<1x2xf32, #tpu.memory_space<vmem>>, %arg8: memref<8x2xf32, #tpu.memory_space<vmem>>) attributes {dimension_semantics = [#tpu.dimension_semantics<parallel>], iteration_bounds = array<i64: 1>, scalar_prefetch = 0 : i64, scratch_operands = 0 : i64, tpu.core_type = #tpu.core_type<tc>, window_params = [{transform_indices = @transform_0, window_bounds = array<i64: 8, 4>}, {pipeline_mode = #tpu.pipeline_mode<synchronous>, transform_indices = @transform_1, window_bounds = array<i64: 4, 64>}, {pipeline_mode = #tpu.pipeline_mode<synchronous>, transform_indices = @transform_2, window_bounds = array<i64: 1, 64>}, {pipeline_mode = #tpu.pipeline_mode<synchronous>, transform_indices = @transform_3, window_bounds = array<i64: 64, 64>}, {pipeline_mode = #tpu.pipeline_mode<synchronous>, transform_indices = @transform_4, window_bounds = array<i64: 1, 64>}, {pipeline_mode = #tpu.pipeline_mode<synchronous>, transform_indices = @transform_5, window_bounds = array<i64: 64, 2>}, {pipeline_mode = #tpu.pipeline_mode<synchronous>, transform_indices = @transform_6, window_bounds = array<i64: 1, 2>}, {transform_indices = @transform_7, window_bounds = array<i64: 8, 2>}]} {
    %c0 = arith.constant 0 : index
    %c0_0 = arith.constant 0 : index
    %0 = vector.load %arg1[%c0, %c0_0] : memref<8x4xf32, #tpu.memory_space<vmem>>, vector<8x4xf32>
    %c0_1 = arith.constant 0 : index
    %c0_2 = arith.constant 0 : index
    %1 = vector.load %arg2[%c0_1, %c0_2] : memref<4x64xf32, #tpu.memory_space<vmem>>, vector<4x64xf32>
    %cst = arith.constant dense<0.000000e+00> : vector<8x64xf32>
    %2 = tpu.matmul %0, %1, %cst {dimension_numbers = #tpu.dot_dimension_numbers<[1], [0], [0], [1], [0, 0, 1, 1], [], []>} : vector<8x4xf32>, vector<4x64xf32>, vector<8x64xf32> -> vector<8x64xf32>
    %c0_3 = arith.constant 0 : index
    %c0_4 = arith.constant 0 : index
    %3 = vector.load %arg3[%c0_3, %c0_4] : memref<1x64xf32, #tpu.memory_space<vmem>>, vector<1x64xf32>
    %4 = vector.broadcast %3 : vector<1x64xf32> to vector<8x64xf32>
    %5 = arith.addf %2, %4 : vector<8x64xf32>
    %cst_5 = arith.constant 0.000000e+00 : f32
    %6 = vector.broadcast %cst_5 : f32 to vector<8x64xf32>
    %7 = arith.maximumf %5, %6 : vector<8x64xf32>
    %c0_6 = arith.constant 0 : index
    %c0_7 = arith.constant 0 : index
    %8 = vector.load %arg4[%c0_6, %c0_7] : memref<64x64xf32, #tpu.memory_space<vmem>>, vector<64x64xf32>
    %cst_8 = arith.constant dense<0.000000e+00> : vector<8x64xf32>
    %9 = tpu.matmul %7, %8, %cst_8 {dimension_numbers = #tpu.dot_dimension_numbers<[1], [0], [0], [1], [0, 0, 1, 1], [], []>} : vector<8x64xf32>, vector<64x64xf32>, vector<8x64xf32> -> vector<8x64xf32>
    %c0_9 = arith.constant 0 : index
    %c0_10 = arith.constant 0 : index
    %10 = vector.load %arg5[%c0_9, %c0_10] : memref<1x64xf32, #tpu.memory_space<vmem>>, vector<1x64xf32>
    %11 = vector.broadcast %10 : vector<1x64xf32> to vector<8x64xf32>
    %12 = arith.addf %9, %11 : vector<8x64xf32>
    %cst_11 = arith.constant 0.000000e+00 : f32
    %13 = vector.broadcast %cst_11 : f32 to vector<8x64xf32>
    %14 = arith.maximumf %12, %13 : vector<8x64xf32>
    %c0_12 = arith.constant 0 : index
    %c0_13 = arith.constant 0 : index
    %15 = vector.load %arg6[%c0_12, %c0_13] : memref<64x2xf32, #tpu.memory_space<vmem>>, vector<64x2xf32>
    %cst_14 = arith.constant dense<0.000000e+00> : vector<8x2xf32>
    %16 = tpu.matmul %14, %15, %cst_14 {dimension_numbers = #tpu.dot_dimension_numbers<[1], [0], [0], [1], [0, 0, 1, 1], [], []>} : vector<8x64xf32>, vector<64x2xf32>, vector<8x2xf32> -> vector<8x2xf32>
    %c0_15 = arith.constant 0 : index
    %c0_16 = arith.constant 0 : index
    %17 = vector.load %arg7[%c0_15, %c0_16] : memref<1x2xf32, #tpu.memory_space<vmem>>, vector<1x2xf32>
    %18 = vector.broadcast %17 : vector<1x2xf32> to vector<8x2xf32>
    %19 = arith.addf %16, %18 : vector<8x2xf32>
    %c0_17 = arith.constant 0 : index
    %c0_18 = arith.constant 0 : index
    %20 = vector.load %arg8[%c0_17, %c0_18] : memref<8x2xf32, #tpu.memory_space<vmem>>, vector<8x2xf32>
    tpu.vector_store %arg8[%c0_17, %c0_18], %19 {strides = array<i32>} : memref<8x2xf32, #tpu.memory_space<vmem>>, vector<8x2xf32>,
    return
  }
  func.func @transform_0(%arg0: i32) -> (i32, i32) {
    %c0_i32 = arith.constant 0 : i32
    %c0_i32_0 = arith.constant 0 : i32
    return %arg0, %c0_i32 : i32, i32
  }
  func.func @transform_1(%arg0: i32) -> (i32, i32) {
    %c0_i32 = arith.constant 0 : i32
    %c0_i32_0 = arith.constant 0 : i32
    %c0_i32_1 = arith.constant 0 : i32
    return %c0_i32, %c0_i32_0 : i32, i32
  }
  func.func @transform_2(%arg0: i32) -> (i32, i32) {
    %c0_i32 = arith.constant 0 : i32
    %c0_i32_0 = arith.constant 0 : i32
    %c0_i32_1 = arith.constant 0 : i32
    return %c0_i32, %c0_i32_0 : i32, i32
  }
  func.func @transform_3(%arg0: i32) -> (i32, i32) {
    %c0_i32 = arith.constant 0 : i32
    %c0_i32_0 = arith.constant 0 : i32
    %c0_i32_1 = arith.constant 0 : i32
    return %c0_i32, %c0_i32_0 : i32, i32
  }
  func.func @transform_4(%arg0: i32) -> (i32, i32) {
    %c0_i32 = arith.constant 0 : i32
    %c0_i32_0 = arith.constant 0 : i32
    %c0_i32_1 = arith.constant 0 : i32
    return %c0_i32, %c0_i32_0 : i32, i32
  }
  func.func @transform_5(%arg0: i32) -> (i32, i32) {
    %c0_i32 = arith.constant 0 : i32
    %c0_i32_0 = arith.constant 0 : i32
    %c0_i32_1 = arith.constant 0 : i32
    return %c0_i32, %c0_i32_0 : i32, i32
  }
  func.func @transform_6(%arg0: i32) -> (i32, i32) {
    %c0_i32 = arith.constant 0 : i32
    %c0_i32_0 = arith.constant 0 : i32
    %c0_i32_1 = arith.constant 0 : i32
    return %c0_i32, %c0_i32_0 : i32, i32
  }
  func.func @transform_7(%arg0: i32) -> (i32, i32) {
    %c0_i32 = arith.constant 0 : i32
    %c0_i32_0 = arith.constant 0 : i32
    return %arg0, %c0_i32 : i32, i32
  }
}

</mosaic_0001>

<llo_original>
// kernel: tpu_custom_call.1
$region0: #{tpu_custom_call.1}
  #allocation0 [shape = 'u32[]', space=smem, size = 0x4, offset = 0x4, fixed_abs, tag = 'smem constant byte address 0x4 - core index']
  #allocation1 [shape = 'u32[144,128]{1,0:T(1,128)}', space=vmem, size = 0x12000, scoped, tag = 'internal scratch']
  %s0 = inlined_call_operand.vmem [shape: f32[8,4], index: 0, kind: input, shape index: {}]
  %s1 = inlined_call_operand.vmem [shape: f32[4,64], index: 1, kind: input, shape index: {}]
  %s2 = inlined_call_operand.vmem [shape: f32[1,64], index: 2, kind: input, shape index: {}]
  %s3 = inlined_call_operand.vmem [shape: f32[64,64], index: 3, kind: input, shape index: {}]
  %s4 = inlined_call_operand.vmem [shape: f32[1,64], index: 4, kind: input, shape index: {}]
  %s5 = inlined_call_operand.vmem [shape: f32[64,2], index: 5, kind: input, shape index: {}]
  %s6 = inlined_call_operand.vmem [shape: f32[1,2], index: 6, kind: input, shape index: {}]
  %s7 = inlined_call_operand.vmem [shape: f32[8,2], index: 7, kind: output, shape index: {}]
  %s8 = sld [smem:[#allocation0]]
  $region38: #{tpu_custom_call.1} parent=0
    _
  %s10 = ssub.s32 1, %s8
  %s11 = scalar_select 0, %s10, %s8
  // Predicated region
  $region2: #{tpu_custom_call.1} parent=0 // pred_check
    _
  $region3: #{tpu_custom_call.1} parent=0 // pred_check_branch
    %13 = sbr.rel (0) target = $region5
  $region4: #{tpu_custom_call.1} parent=0 // pred_region
    _
  $region5: #{tpu_custom_call.1} parent=0 // pred_fallthru
    _
  // Predicated region
  $region6: #{tpu_custom_call.1} parent=0 // pred_check
    _
  $region7: #{tpu_custom_call.1} parent=0 // pred_check_branch
    %15 = sbr.rel (0) target = $region9
  $region8: #{tpu_custom_call.1} parent=0 // pred_region
    _
  $region9: #{tpu_custom_call.1} parent=0 // pred_fallthru
    _
  // Predicated region
  $region10: #{tpu_custom_call.1} parent=0 // pred_check
    _
  $region11: #{tpu_custom_call.1} parent=0 // pred_check_branch
    %17 = sbr.rel (0) target = $region13
  $region12: #{tpu_custom_call.1} parent=0 // pred_region
    _
  $region13: #{tpu_custom_call.1} parent=0 // pred_fallthru
    _
  // Predicated region
  $region14: #{tpu_custom_call.1} parent=0 // pred_check
    _
  $region15: #{tpu_custom_call.1} parent=0 // pred_check_branch
    %19 = sbr.rel (0) target = $region17
  $region16: #{tpu_custom_call.1} parent=0 // pred_region
    _
  $region17: #{tpu_custom_call.1} parent=0 // pred_fallthru
    _
  // Predicated region
  $region18: #{tpu_custom_call.1} parent=0 // pred_check
    _
  $region19: #{tpu_custom_call.1} parent=0 // pred_check_branch
    %21 = sbr.rel (0) target = $region21
  $region20: #{tpu_custom_call.1} parent=0 // pred_region
    _
  $region21: #{tpu_custom_call.1} parent=0 // pred_fallthru
    _
  // Predicated region
  $region22: #{tpu_custom_call.1} parent=0 // pred_check
    _
  $region23: #{tpu_custom_call.1} parent=0 // pred_check_branch
    %23 = sbr.rel (0) target = $region25
  $region24: #{tpu_custom_call.1} parent=0 // pred_region
    _
  $region25: #{tpu_custom_call.1} parent=0 // pred_fallthru
    _
  // Predicated region
  $region26: #{tpu_custom_call.1} parent=0 // pred_check
    _
  $region27: #{tpu_custom_call.1} parent=0 // pred_check_branch
    %25 = sbr.rel (0) target = $region29
  $region28: #{tpu_custom_call.1} parent=0 // pred_region
    _
  $region29: #{tpu_custom_call.1} parent=0 // pred_fallthru
    _
  %v26 = vld [vmem:[%s0] sm:$0xff]
  %v27 = vld [vmem:[%s1] sm:$0xf]
  %v28 = vld [vmem:[%s2] sm:$0x1]
  %v30 = vlaneseq
  %v31 = vshrl.u32 %v30, 7
  %v32 = vsub.s32 0, %v31
  %v33 = vrot.slane %v28, %v32
  %vm35 = vcmask 31744
  %v37 = vsel %vm35, %v26, 0
  %vm39 = vcmask 1043456
  %v41 = vsel %vm39, %v27, 0
  %43 = vmatprep.subr.mxu0 0.0
  %44 = vmatpush1.msra.mxu0 %v41
  %45 = vmatprep.subr.mxu0 0.0
  %46 = vmatpush1.msra.mxu0 0.0
  %47 = vmatprep.subr.mxu0 0.0
  %48 = vmatpush1.msra.mxu0 0.0
  %49 = vmatprep.subr.mxu0 0.0
  %50 = vmatpush1.msra.mxu0 0.0
  %51 = vmatprep.subr.mxu0 0.0
  %52 = vmatpush1.msra.mxu0 0.0
  %53 = vmatprep.subr.mxu0 0.0
  %54 = vmatpush1.msra.mxu0 0.0
  %55 = vmatprep.subr.mxu0 0.0
  %56 = vmatpush1.msra.mxu0 0.0
  %57 = vmatprep.subr.mxu0 0.0
  %58 = vmatpush1.msra.mxu0 0.0
  %59 = vmatprep.subr.mxu0 0.0
  %60 = vmatpush1.msra.mxu0 0.0
  %61 = vmatprep.subr.mxu0 0.0
  %62 = vmatpush1.msra.mxu0 0.0
  %63 = vmatprep.subr.mxu0 0.0
  %64 = vmatpush1.msra.mxu0 0.0
  %65 = vmatprep.subr.mxu0 0.0
  %66 = vmatpush1.msra.mxu0 0.0
  %67 = vmatprep.subr.mxu0 0.0
  %68 = vmatpush1.msra.mxu0 0.0
  %69 = vmatprep.subr.mxu0 0.0
  %70 = vmatpush1.msra.mxu0 0.0
  %71 = vmatprep.subr.mxu0 0.0
  %72 = vmatpush1.msra.mxu0 0.0
  %73 = vmatprep.subr.mxu0 0.0
  %74 = vmatpush1.msra.mxu0 0.0
  %75 = vmatprep.subr.mxu0 0.0
  %76 = vmatpush1.msra.mxu0 0.0
  %77 = vmatprep.subr.mxu0 0.0
  %78 = vmatpush1.msra.mxu0 0.0
  %79 = vmatprep.subr.mxu0 0.0
  %80 = vmatpush1.msra.mxu0 0.0
  %81 = vmatprep.subr.mxu0 0.0
  %82 = vmatpush1.msra.mxu0 0.0
  %83 = vmatprep.subr.mxu0 0.0
  %84 = vmatpush1.msra.mxu0 0.0
  %85 = vmatprep.subr.mxu0 0.0
  %86 = vmatpush1.msra.mxu0 0.0
  %87 = vmatprep.subr.mxu0 0.0
  %88 = vmatpush1.msra.mxu0 0.0
  %89 = vmatprep.subr.mxu0 0.0
  %90 = vmatpush1.msra.mxu0 0.0
  %91 = vmatprep.subr.mxu0 0.0
  %92 = vmatpush1.msra.mxu0 0.0
  %93 = vmatprep.subr.mxu0 0.0
  %94 = vmatpush1.msra.mxu0 0.0
  %95 = vmatprep.subr.mxu0 0.0
  %96 = vmatpush1.msra.mxu0 0.0
  %97 = vmatprep.subr.mxu0 0.0
  %98 = vmatpush1.msra.mxu0 0.0
  %99 = vmatprep.subr.mxu0 0.0
  %100 = vmatpush1.msra.mxu0 0.0
  %101 = vmatprep.subr.mxu0 0.0
  %102 = vmatpush1.msra.mxu0 0.0
  %103 = vmatprep.subr.mxu0 0.0
  %104 = vmatpush1.msra.mxu0 0.0
  %105 = vmatprep.subr.mxu0 0.0
  %106 = vmatpush1.msra.mxu0 0.0
  %107 = vmatprep.mubr.f32.mxu0 0.0
  %108 = vmatmul.mubr.f32.gmra.mrb[0].mxu0 %v37
  %v109 = vpop.f32.mrb[0].mxu0
  %v110 = vadd.f32 %v33, %v109
  %v111 = vpop.f32.mrb[0].mxu0
  %112 = vdwg.mxu0
  %v113 = vmax.f32 %v110, 0.0
  %v114 = vld [vmem:[%s3] sm:$0xff]
  %v115 = vld [vmem:[%s3 + $0x8] sm:$0xff]
  %v116 = vld [vmem:[%s3 + $0x10] sm:$0xff]
  %v117 = vld [vmem:[%s3 + $0x18] sm:$0xff]
  %v118 = vld [vmem:[%s3 + $0x20] sm:$0xff]
  %v119 = vld [vmem:[%s3 + $0x28] sm:$0xff]
  %v120 = vld [vmem:[%s3 + $0x30] sm:$0xff]
  %v121 = vld [vmem:[%s3 + $0x38] sm:$0xff]
  %v122 = vld [vmem:[%s4] sm:$0x1]
  %v124 = vlaneseq
  %v125 = vshrl.u32 %v124, 7
  %v126 = vsub.s32 0, %v125
  %v127 = vrot.slane %v122, %v126
  %vm129 = vcmask 523264
  %v131 = vsel %vm129, %v113, 0
  %133 = vmatprep.subr.mxu0 0.0
  %134 = vmatpush1.msra.mxu0 %v114
  %135 = vmatprep.subr.mxu0 0.0
  %136 = vmatpush1.msra.mxu0 %v115
  %137 = vmatprep.subr.mxu0 0.0
  %138 = vmatpush1.msra.mxu0 %v116
  %139 = vmatprep.subr.mxu0 0.0
  %140 = vmatpush1.msra.mxu0 %v117
  %141 = vmatprep.subr.mxu0 0.0
  %142 = vmatpush1.msra.mxu0 %v118
  %143 = vmatprep.subr.mxu0 0.0
  %144 = vmatpush1.msra.mxu0 %v119
  %145 = vmatprep.subr.mxu0 0.0
  %146 = vmatpush1.msra.mxu0 %v120
  %147 = vmatprep.subr.mxu0 0.0
  %148 = vmatpush1.msra.mxu0 %v121
  %149 = vmatprep.subr.mxu0 0.0
  %150 = vmatpush1.msra.mxu0 0.0
  %151 = vmatprep.subr.mxu0 0.0
  %152 = vmatpush1.msra.mxu0 0.0
  %153 = vmatprep.subr.mxu0 0.0
  %154 = vmatpush1.msra.mxu0 0.0
  %155 = vmatprep.subr.mxu0 0.0
  %156 = vmatpush1.msra.mxu0 0.0
  %157 = vmatprep.subr.mxu0 0.0
  %158 = vmatpush1.msra.mxu0 0.0
  %159 = vmatprep.subr.mxu0 0.0
  %160 = vmatpush1.msra.mxu0 0.0
  %161 = vmatprep.subr.mxu0 0.0
  %162 = vmatpush1.msra.mxu0 0.0
  %163 = vmatprep.subr.mxu0 0.0
  %164 = vmatpush1.msra.mxu0 0.0
  %165 = vmatprep.subr.mxu0 0.0
  %166 = vmatpush1.msra.mxu0 0.0
  %167 = vmatprep.subr.mxu0 0.0
  %168 = vmatpush1.msra.mxu0 0.0
  %169 = vmatprep.subr.mxu0 0.0
  %170 = vmatpush1.msra.mxu0 0.0
  %171 = vmatprep.subr.mxu0 0.0
  %172 = vmatpush1.msra.mxu0 0.0
  %173 = vmatprep.subr.mxu0 0.0
  %174 = vmatpush1.msra.mxu0 0.0
  %175 = vmatprep.subr.mxu0 0.0
  %176 = vmatpush1.msra.mxu0 0.0
  %177 = vmatprep.subr.mxu0 0.0
  %178 = vmatpush1.msra.mxu0 0.0
  %179 = vmatprep.subr.mxu0 0.0
  %180 = vmatpush1.msra.mxu0 0.0
  %181 = vmatprep.subr.mxu0 0.0
  %182 = vmatpush1.msra.mxu0 0.0
  %183 = vmatprep.subr.mxu0 0.0
  %184 = vmatpush1.msra.mxu0 0.0
  %185 = vmatprep.subr.mxu0 0.0
  %186 = vmatpush1.msra.mxu0 0.0
  %187 = vmatprep.subr.mxu0 0.0
  %188 = vmatpush1.msra.mxu0 0.0
  %189 = vmatprep.subr.mxu0 0.0
  %190 = vmatpush1.msra.mxu0 0.0
  %191 = vmatprep.subr.mxu0 0.0
  %192 = vmatpush1.msra.mxu0 0.0
  %193 = vmatprep.subr.mxu0 0.0
  %194 = vmatpush1.msra.mxu0 0.0
  %195 = vmatprep.subr.mxu0 0.0
  %196 = vmatpush1.msra.mxu0 0.0
  %197 = vmatprep.mubr.f32.mxu0 0.0
  %198 = vmatmul.mubr.f32.gmra.mrb[0].mxu0 %v131
  %v199 = vpop.f32.mrb[0].mxu0
  %v200 = vadd.f32 %v127, %v199
  %v201 = vpop.f32.mrb[0].mxu0
  %202 = vdwg.mxu0
  %v203 = vmax.f32 %v200, 0.0
  %v204 = vld [vmem:[%s5] sm:$0xff]
  %v205 = vld [vmem:[%s5 + $0x8] sm:$0xff]
  %v206 = vld [vmem:[%s5 + $0x10] sm:$0xff]
  %v207 = vld [vmem:[%s5 + $0x18] sm:$0xff]
  %v208 = vld [vmem:[%s5 + $0x20] sm:$0xff]
  %v209 = vld [vmem:[%s5 + $0x28] sm:$0xff]
  %v210 = vld [vmem:[%s5 + $0x30] sm:$0xff]
  %v211 = vld [vmem:[%s5 + $0x38] sm:$0xff]
  %v212 = vld [vmem:[%s6] sm:$0x1]
  %v214 = vlaneseq
  %v215 = vshrl.u32 %v214, 7
  %v216 = vsub.s32 0, %v215
  %v217 = vrot.slane %v212, %v216
  %v220 = vsel %vm129, %v203, 0
  %222 = vmatprep.subr.mxu0 0.0
  %223 = vmatpush1.msra.mxu0 %v204
  %224 = vmatprep.subr.mxu0 0.0
  %225 = vmatpush1.msra.mxu0 %v205
  %226 = vmatprep.subr.mxu0 0.0
  %227 = vmatpush1.msra.mxu0 %v206
  %228 = vmatprep.subr.mxu0 0.0
  %229 = vmatpush1.msra.mxu0 %v207
  %230 = vmatprep.subr.mxu0 0.0
  %231 = vmatpush1.msra.mxu0 %v208
  %232 = vmatprep.subr.mxu0 0.0
  %233 = vmatpush1.msra.mxu0 %v209
  %234 = vmatprep.subr.mxu0 0.0
  %235 = vmatpush1.msra.mxu0 %v210
  %236 = vmatprep.subr.mxu0 0.0
  %237 = vmatpush1.msra.mxu0 %v211
  %238 = vmatprep.subr.mxu0 0.0
  %239 = vmatpush1.msra.mxu0 0.0
  %240 = vmatprep.subr.mxu0 0.0
  %241 = vmatpush1.msra.mxu0 0.0
  %242 = vmatprep.subr.mxu0 0.0
  %243 = vmatpush1.msra.mxu0 0.0
  %244 = vmatprep.subr.mxu0 0.0
  %245 = vmatpush1.msra.mxu0 0.0
  %246 = vmatprep.subr.mxu0 0.0
  %247 = vmatpush1.msra.mxu0 0.0
  %248 = vmatprep.subr.mxu0 0.0
  %249 = vmatpush1.msra.mxu0 0.0
  %250 = vmatprep.subr.mxu0 0.0
  %251 = vmatpush1.msra.mxu0 0.0
  %252 = vmatprep.subr.mxu0 0.0
  %253 = vmatpush1.msra.mxu0 0.0
  %254 = vmatprep.subr.mxu0 0.0
  %255 = vmatpush1.msra.mxu0 0.0
  %256 = vmatprep.subr.mxu0 0.0
  %257 = vmatpush1.msra.mxu0 0.0
  %258 = vmatprep.subr.mxu0 0.0
  %259 = vmatpush1.msra.mxu0 0.0
  %260 = vmatprep.subr.mxu0 0.0
  %261 = vmatpush1.msra.mxu0 0.0
  %262 = vmatprep.subr.mxu0 0.0
  %263 = vmatpush1.msra.mxu0 0.0
  %264 = vmatprep.subr.mxu0 0.0
  %265 = vmatpush1.msra.mxu0 0.0
  %266 = vmatprep.subr.mxu0 0.0
  %267 = vmatpush1.msra.mxu0 0.0
  %268 = vmatprep.subr.mxu0 0.0
  %269 = vmatpush1.msra.mxu0 0.0
  %270 = vmatprep.subr.mxu0 0.0
  %271 = vmatpush1.msra.mxu0 0.0
  %272 = vmatprep.subr.mxu0 0.0
  %273 = vmatpush1.msra.mxu0 0.0
  %274 = vmatprep.subr.mxu0 0.0
  %275 = vmatpush1.msra.mxu0 0.0
  %276 = vmatprep.subr.mxu0 0.0
  %277 = vmatpush1.msra.mxu0 0.0
  %278 = vmatprep.subr.mxu0 0.0
  %279 = vmatpush1.msra.mxu0 0.0
  %280 = vmatprep.subr.mxu0 0.0
  %281 = vmatpush1.msra.mxu0 0.0
  %282 = vmatprep.subr.mxu0 0.0
  %283 = vmatpush1.msra.mxu0 0.0
  %284 = vmatprep.subr.mxu0 0.0
  %285 = vmatpush1.msra.mxu0 0.0
  %286 = vmatprep.mubr.f32.mxu0 0.0
  %287 = vmatmul.mubr.f32.gmra.mrb[0].mxu0 %v220
  %v288 = vpop.f32.mrb[0].mxu0
  %v289 = vadd.f32 %v217, %v288
  %v290 = vpop.f32.mrb[0].mxu0
  %291 = vdwg.mxu0
  %vm292 = vcmask 15360
  %293 = vst.msk [vmem:[%s7] sm:$0xff] %vm292, %v289
  // Predicated region
  $region30: #{tpu_custom_call.1} parent=0 // pred_check
    _
  $region31: #{tpu_custom_call.1} parent=0 // pred_check_branch
    %295 = sbr.rel (0) target = $region33
  $region32: #{tpu_custom_call.1} parent=0 // pred_region
    _
  $region33: #{tpu_custom_call.1} parent=0 // pred_fallthru
    _
  // Predicated region
  $region34: #{tpu_custom_call.1} parent=0 // pred_check
    _
  $region35: #{tpu_custom_call.1} parent=0 // pred_check_branch
    %297 = sbr.rel (0) target = $region37
  $region36: #{tpu_custom_call.1} parent=0 // pred_region
    _
  $region37: #{tpu_custom_call.1} parent=0 // pred_fallthru
    _

</llo_original>
